<compile_context>
chip_gen: v7x
topology: tpu7x:2x2x1
jax: 0.10.0
libtpu: 0.0.40
codegen_flags: <defaults>
</compile_context>

<pallas_src>
import functools

import jax
import jax.numpy as jnp
from jax.experimental import pallas as pl
from jax.experimental.pallas import tpu as pltpu


def _round_up(v, m):
    return ((v + m - 1) // m) * m


def _xcorr_kernel(x_ref, zcat_ref, o_ref, *, Hz, Ho, Wo):
    # x_ref:    (1, Hx, Kxp)  bf16 -- search region, lanes = flattened (w, c)
    # zcat_ref: (1, Kxp, Nz)  bf16 -- Toeplitz-expanded template, Nz = Hz*Wo
    # o_ref:    (1, Ho, Wo)   f32
    X = x_ref[0]        # (Hx, Kxp)
    Zc = zcat_ref[0]    # (Kxp, Nz)

    # Single MXU contraction (bf16 in, f32 accumulate, default precision):
    #   R[h, p*Wo + j] = sum_{q,c} x[h, j+q, c] * z[p, q, c]
    R = jnp.dot(X, Zc, preferred_element_type=jnp.float32)   # (Hx, Nz) f32

    # Reduce over template rows p with static slice-adds (Hz is small; the
    # unrolled VPU adds act on tiny (Ho, Wo) tiles -> negligible vreg pressure).
    acc = R[0:Ho, 0:Wo]
    for p in range(1, Hz):
        acc = acc + R[p:p + Ho, p * Wo:(p + 1) * Wo]

    o_ref[0] = acc


def xcorr(z, x):
    """Pallas equivalent of XCorr.forward(z, x)."""
    B, C, Hz, Wz = z.shape
    Bx, Cx, Hx, Wx = x.shape
    assert B == Bx and C == Cx
    Ho, Wo = Hx - Hz + 1, Wx - Wz + 1
    Kx = Wx * C                       # contraction width per row of x
    Kxp = _round_up(Kx, 128)          # lane-pad the contraction axis only
    Nz = Hz * Wo                      # columns of the shifted-template matrix
    bf16 = jnp.bfloat16

    # ---- layout plumbing in XLA (no compute, no inflation of x) ------------
    # x -> NHWC -> fold (w, c) into the lane axis: (B, Hx, Wx*C)
    x2 = jnp.transpose(x, (0, 2, 3, 1)).reshape(B, Hx, Kx)
    if Kxp != Kx:
        x2 = jnp.pad(x2, ((0, 0), (0, 0), (0, Kxp - Kx)))
    x2 = x2.astype(bf16)

    # Toeplitz expansion of the *small* operand z:
    #   zcat[b, w*C + c, p*Wo + j] = z[b, c, p, w-j] for 0 <= w-j < Wz, else 0
    zc = jnp.transpose(z, (0, 2, 3, 1)).reshape(B, Hz, Wz * C)
    cols = []
    for p in range(Hz):
        zp = zc[:, p, :]                                        # (B, Wz*C)
        for j in range(Wo):
            cols.append(jnp.pad(zp, ((0, 0), (j * C, Kxp - Wz * C - j * C))))
    zcat = jnp.stack(cols, axis=-1).astype(bf16)                # (B, Kxp, Nz)

    kernel = functools.partial(_xcorr_kernel, Hz=Hz, Ho=Ho, Wo=Wo)

    out = pl.pallas_call(
        kernel,
        out_shape=jax.ShapeDtypeStruct((B, Ho, Wo), jnp.float32),
        grid_spec=pltpu.PrefetchScalarGridSpec(
            num_scalar_prefetch=0,
            grid=(B,),                                  # one sample per step
            in_specs=[
                pl.BlockSpec((1, Hx, Kxp), lambda b: (b, 0, 0)),
                pl.BlockSpec((1, Kxp, Nz), lambda b: (b, 0, 0)),
            ],
            out_specs=pl.BlockSpec((1, Ho, Wo), lambda b: (b, 0, 0)),
        ),
        compiler_params=pltpu.CompilerParams(
            dimension_semantics=("parallel",)),
    )(x2, zcat)

    return out.reshape(B, 1, Ho, Wo)


def _xcorr_ref(z, x):
    # Pure-JAX f32 shift-accumulate reference for validation.
    B, C, Hz, Wz = z.shape
    _, _, Hx, Wx = x.shape
    Ho, Wo = Hx - Hz + 1, Wx - Wz + 1
    out = jnp.zeros((B, 1, Ho, Wo), jnp.float32)
    for p in range(Hz):
        for q in range(Wz):
            patch = x[:, :, p:p + Ho, q:q + Wo]
            w = z[:, :, p, q][:, :, None, None]
            out = out + jnp.sum(patch * w, axis=1, keepdims=True)
    return out


if __name__ == "__main__":
    key = jax.random.PRNGKey(0)
    kz, kx = jax.random.split(key)

    B, C = 2, 4
    Hz = Wz = 8      # template ("kernel") spatial size
    Hx = Wx = 16     # search region spatial size

    z = jax.random.normal(kz, (B, C, Hz, Wz), dtype=jnp.float32)
    x = jax.random.normal(kx, (B, C, Hx, Wx), dtype=jnp.float32)

    out = xcorr(z, x)
    jax.block_until_ready(out)

    assert out.shape == (B, 1, Hx - Hz + 1, Wx - Wz + 1)

    # The kernel computes with bf16 inputs and f32 accumulation; validate
    # against the reference evaluated on the same bf16-rounded inputs.
    zb = z.astype(jnp.bfloat16).astype(jnp.float32)
    xb = x.astype(jnp.bfloat16).astype(jnp.float32)
    ref = _xcorr_ref(zb, xb)
    assert jnp.allclose(out, ref, atol=1e-2, rtol=1e-2)

    print("KERNEL_OK")
</pallas_src>

<mosaic_0001>
module attributes {stable_mosaic.version = 11 : i64} {
  func.func @_xcorr_kernel(%arg0: i32, %arg1: memref<1x16x128xbf16, #tpu.memory_space<vmem>>, %arg2: memref<1x128x72xbf16, #tpu.memory_space<vmem>>, %arg3: memref<1x9x9xf32, #tpu.memory_space<vmem>>) attributes {dimension_semantics = [#tpu.dimension_semantics<parallel>], iteration_bounds = array<i64: 2>, scalar_prefetch = 0 : i64, scratch_operands = 0 : i64, tpu.core_type = #tpu.core_type<tc>, window_params = [{transform_indices = @transform_0, window_bounds = array<i64: 1, 16, 128>}, {transform_indices = @transform_1, window_bounds = array<i64: 1, 128, 72>}, {transform_indices = @transform_2, window_bounds = array<i64: 1, 9, 9>}]} {
    %c0 = arith.constant 0 : index
    %c0_0 = arith.constant 0 : index
    %c0_1 = arith.constant 0 : index
    %0 = vector.load %arg1[%c0, %c0_0, %c0_1] : memref<1x16x128xbf16, #tpu.memory_space<vmem>>, vector<1x16x128xbf16>
    %1 = vector.shape_cast %0 : vector<1x16x128xbf16> to vector<16x128xbf16>
    %c0_2 = arith.constant 0 : index
    %c0_3 = arith.constant 0 : index
    %c0_4 = arith.constant 0 : index
    %2 = vector.load %arg2[%c0_2, %c0_3, %c0_4] : memref<1x128x72xbf16, #tpu.memory_space<vmem>>, vector<1x128x72xbf16>
    %3 = vector.shape_cast %2 : vector<1x128x72xbf16> to vector<128x72xbf16>
    %cst = arith.constant dense<0.000000e+00> : vector<16x72xf32>
    %4 = tpu.matmul %1, %3, %cst {dimension_numbers = #tpu.dot_dimension_numbers<[1], [0], [0], [1], [0, 0, 1, 1], [], []>} : vector<16x128xbf16>, vector<128x72xbf16>, vector<16x72xf32> -> vector<16x72xf32>
    %5 = vector.extract_strided_slice %4 {offsets = [0, 0], sizes = [9, 9], strides = [1, 1]} : vector<16x72xf32> to vector<9x9xf32>
    %6 = vector.extract_strided_slice %4 {offsets = [1, 9], sizes = [9, 9], strides = [1, 1]} : vector<16x72xf32> to vector<9x9xf32>
    %7 = arith.addf %5, %6 : vector<9x9xf32>
    %8 = vector.extract_strided_slice %4 {offsets = [2, 18], sizes = [9, 9], strides = [1, 1]} : vector<16x72xf32> to vector<9x9xf32>
    %9 = arith.addf %7, %8 : vector<9x9xf32>
    %10 = vector.extract_strided_slice %4 {offsets = [3, 27], sizes = [9, 9], strides = [1, 1]} : vector<16x72xf32> to vector<9x9xf32>
    %11 = arith.addf %9, %10 : vector<9x9xf32>
    %12 = vector.extract_strided_slice %4 {offsets = [4, 36], sizes = [9, 9], strides = [1, 1]} : vector<16x72xf32> to vector<9x9xf32>
    %13 = arith.addf %11, %12 : vector<9x9xf32>
    %14 = vector.extract_strided_slice %4 {offsets = [5, 45], sizes = [9, 9], strides = [1, 1]} : vector<16x72xf32> to vector<9x9xf32>
    %15 = arith.addf %13, %14 : vector<9x9xf32>
    %16 = vector.extract_strided_slice %4 {offsets = [6, 54], sizes = [9, 9], strides = [1, 1]} : vector<16x72xf32> to vector<9x9xf32>
    %17 = arith.addf %15, %16 : vector<9x9xf32>
    %18 = vector.extract_strided_slice %4 {offsets = [7, 63], sizes = [9, 9], strides = [1, 1]} : vector<16x72xf32> to vector<9x9xf32>
    %19 = arith.addf %17, %18 : vector<9x9xf32>
    %c0_5 = arith.constant 0 : index
    %c0_6 = arith.constant 0 : index
    %c0_7 = arith.constant 0 : index
    %20 = vector.load %arg3[%c0_5, %c0_6, %c0_7] : memref<1x9x9xf32, #tpu.memory_space<vmem>>, vector<1x9x9xf32>
    %21 = vector.shape_cast %20 : vector<1x9x9xf32> to vector<9x9xf32>
    %22 = vector.shape_cast %19 : vector<9x9xf32> to vector<1x9x9xf32>
    tpu.vector_store %arg3[%c0_5, %c0_6, %c0_7], %22 {strides = array<i32>} : memref<1x9x9xf32, #tpu.memory_space<vmem>>, vector<1x9x9xf32>,
    return
  }
  func.func @transform_0(%arg0: i32) -> (i32, i32, i32) {
    %c0_i32 = arith.constant 0 : i32
    %c0_i32_0 = arith.constant 0 : i32
    %c0_i32_1 = arith.constant 0 : i32
    return %arg0, %c0_i32, %c0_i32_0 : i32, i32, i32
  }
  func.func @transform_1(%arg0: i32) -> (i32, i32, i32) {
    %c0_i32 = arith.constant 0 : i32
    %c0_i32_0 = arith.constant 0 : i32
    %c0_i32_1 = arith.constant 0 : i32
    return %arg0, %c0_i32, %c0_i32_0 : i32, i32, i32
  }
  func.func @transform_2(%arg0: i32) -> (i32, i32, i32) {
    %c0_i32 = arith.constant 0 : i32
    %c0_i32_0 = arith.constant 0 : i32
    %c0_i32_1 = arith.constant 0 : i32
    return %arg0, %c0_i32, %c0_i32_0 : i32, i32, i32
  }
}

</mosaic_0001>

<llo_original>
// kernel: tpu_custom_call.1
$region0: #{tpu_custom_call.1}
  #allocation0 [shape = 'u32[]', space=smem, size = 0x4, offset = 0x4, fixed_abs, tag = 'smem constant byte address 0x4 - core index']
  #allocation1 [shape = 'u32[144,128]{1,0:T(1,128)}', space=vmem, size = 0x12000, scoped, tag = 'internal scratch']
  %s0 = inlined_call_operand.vmem [shape: bf16[2,16,128], index: 0, kind: input, shape index: {}]
  %s1 = inlined_call_operand.vmem [shape: bf16[2,128,72], index: 1, kind: input, shape index: {}]
  %s2 = inlined_call_operand.vmem [shape: f32[2,9,9], index: 2, kind: output, shape index: {}]
  %s3 = sld [smem:[#allocation0]]
  $region41: #{tpu_custom_call.1} parent=0
    _
  %s5 = ssub.s32 1, %s3
  %s6 = scalar_select 0, %s5, %s3
  loop: start=0, step=1, limit=4
  $region2: #{tpu_custom_call.1} parent=0 // loop_pre_header
    _
  $region3: #{tpu_custom_call.1} parent=0 // loop_header
    %s8 = sphi 0, %s12
    %p9 = scmp.ge.s32.totalorder %s8, 4
    %s18 = sphi 0, %s20
    %s21 = sphi 0, %s18
    %s22 = sphi 0, %s21
    %s38 = sphi 0, %s22
    %s44 = sphi 0, %s46
    %s47 = sphi 0, %s44
    %s48 = sphi 0, %s47
    %s64 = sphi 0, %s48
    %s70 = sphi 0, %s72
    %s73 = sphi 0, %s70
    %s74 = sphi 0, %s73
    %s90 = sphi 0, %s74
  $region4: #{tpu_custom_call.1} parent=0 // loop_header_branch
    %11 = sbr.rel (%p9) target = $region8
  $region5: #{tpu_custom_call.1} parent=0 // loop_body
    %s13 = ssub.s32 %s8, 1
    %s14 = ssub.s32 %s8, 2
    %s15 = sadd.s32 %s8, 1
    %s16 = ssub.s32 %s8, %s15
    %p17 = scmp.eq.s32.totalorder %s16, 0
    %s19 = sadd.s32 %s18, 1
    %s20 = scalar_select %p17, %s18, %s19
    %p23 = pneg %p17
    %p24 = scmp.eq.s32.totalorder %s8, 1
    %p25 = por %p23, %p24
    %p26 = scmp.ne.s32.totalorder %s18, %s21
    %p27 = scmp.eq.s32.totalorder %s8, 0
    %p28 = por %p26, %p27
    %p29 = scmp.ne.s32.totalorder %s18, %s21
    %p30 = scmp.eq.s32.totalorder %s13, 1
    %p31 = por %p29, %p30
    %p32 = scmp.ne.s32.totalorder %s21, %s22
    %p33 = scmp.eq.s32.totalorder %s13, 0
    %p34 = por %p32, %p33
    %p35 = scmp.ne.s32.totalorder %s21, %s22
    %p36 = scmp.eq.s32.totalorder %s14, 1
    %p37 = por %p35, %p36
    %p39 = scmp.ne.s32.totalorder %s22, %s38
    %p40 = scmp.eq.s32.totalorder %s14, 0
    %p41 = por %p39, %p40
    %s42 = ssub.s32 %s8, %s15
    %p43 = scmp.eq.s32.totalorder %s42, 0
    %s45 = sadd.s32 %s44, 1
    %s46 = scalar_select %p43, %s44, %s45
    %p49 = pneg %p43
    %p50 = scmp.eq.s32.totalorder %s8, 1
    %p51 = por %p49, %p50
    %p52 = scmp.ne.s32.totalorder %s44, %s47
    %p53 = scmp.eq.s32.totalorder %s8, 0
    %p54 = por %p52, %p53
    %p55 = scmp.ne.s32.totalorder %s44, %s47
    %p56 = scmp.eq.s32.totalorder %s13, 1
    %p57 = por %p55, %p56
    %p58 = scmp.ne.s32.totalorder %s47, %s48
    %p59 = scmp.eq.s32.totalorder %s13, 0
    %p60 = por %p58, %p59
    %p61 = scmp.ne.s32.totalorder %s47, %s48
    %p62 = scmp.eq.s32.totalorder %s14, 1
    %p63 = por %p61, %p62
    %p65 = scmp.ne.s32.totalorder %s48, %s64
    %p66 = scmp.eq.s32.totalorder %s14, 0
    %p67 = por %p65, %p66
    %s68 = ssub.s32 %s8, %s15
    %p69 = scmp.eq.s32.totalorder %s68, 0
    %s71 = sadd.s32 %s70, 1
    %s72 = scalar_select %p69, %s70, %s71
    %p75 = pneg %p69
    %p76 = scmp.eq.s32.totalorder %s8, 1
    %p77 = por %p75, %p76
    %p78 = scmp.ne.s32.totalorder %s70, %s73
    %p79 = scmp.eq.s32.totalorder %s8, 0
    %p80 = por %p78, %p79
    %p81 = scmp.ne.s32.totalorder %s70, %s73
    %p82 = scmp.eq.s32.totalorder %s13, 1
    %p83 = por %p81, %p82
    %p84 = scmp.ne.s32.totalorder %s73, %s74
    %p85 = scmp.eq.s32.totalorder %s13, 0
    %p86 = por %p84, %p85
    %p87 = scmp.ne.s32.totalorder %s73, %s74
    %p88 = scmp.eq.s32.totalorder %s14, 1
    %p89 = por %p87, %p88
    %p91 = scmp.ne.s32.totalorder %s74, %s90
    %p92 = scmp.eq.s32.totalorder %s14, 0
    %p93 = por %p91, %p92
    %p94 = scmp.le.s32.totalorder 1, %s8
    %p95 = scmp.lt.s32.totalorder %s8, 3
    %p96 = pnand %p94, %p95
    %p97 = pneg %p96
    // Predicated region
    $region9: #{tpu_custom_call.1} parent=5 // pred_check
      _
    $region10: #{tpu_custom_call.1} parent=5 // pred_check_branch
      %99 = sbr.rel (%p96) target = $region12
    $region11: #{tpu_custom_call.1} parent=5 // pred_region
      %s100 = ssub.s32 %s8, 1
    $region12: #{tpu_custom_call.1} parent=5 // pred_fallthru
      _
    %p101 = scmp.lt.s32.totalorder %s8, 2
    // Predicated region
    $region13: #{tpu_custom_call.1} parent=5 // pred_check
      %p102 = pneg %p101
    $region14: #{tpu_custom_call.1} parent=5 // pred_check_branch
      %104 = sbr.rel (%p102) target = $region16
    $region15: #{tpu_custom_call.1} parent=5 // pred_region
      // Predicated region
      $region17: #{tpu_custom_call.1} parent=15 // pred_check
        %p105 = pneg %p28
      $region18: #{tpu_custom_call.1} parent=15 // pred_check_branch
        %107 = sbr.rel (%p105) target = $region20
      $region19: #{tpu_custom_call.1} parent=15 // pred_region
        %p108 = scmp.lt.s32.totalorder %s8, 1
        %s109 = scalar_select %p108, %s8, 1
        %s110 = smul.addr %s109, 2
        %s111 = smul.addr %s110, 4
        %s112 = scalar_lea.vmem %s0, %s111
      $region20: #{tpu_custom_call.1} parent=15 // pred_fallthru
        _
      // Predicated region
      $region21: #{tpu_custom_call.1} parent=15 // pred_check
        %p113 = pneg %p54
      $region22: #{tpu_custom_call.1} parent=15 // pred_check_branch
        %115 = sbr.rel (%p113) target = $region24
      $region23: #{tpu_custom_call.1} parent=15 // pred_region
        %p116 = scmp.lt.s32.totalorder %s8, 1
        %s117 = scalar_select %p116, %s8, 1
        %s118 = smul.addr %s117, 16
        %s119 = smul.addr %s118, 4
        %s120 = scalar_lea.vmem %s1, %s119
      $region24: #{tpu_custom_call.1} parent=15 // pred_fallthru
        _
    $region16: #{tpu_custom_call.1} parent=5 // pred_fallthru
      _
    %p121 = scmp.le.s32.totalorder 1, %s8
    %p122 = scmp.lt.s32.totalorder %s8, 3
    %p123 = pnand %p121, %p122
    %p124 = pneg %p123
    // Predicated region
    $region25: #{tpu_custom_call.1} parent=5 // pred_check
      _
    $region26: #{tpu_custom_call.1} parent=5 // pred_check_branch
      %126 = sbr.rel (%p123) target = $region28
    $region27: #{tpu_custom_call.1} parent=5 // pred_region
      %s127 = ssub.s32 %s8, 1
      %p128 = scmp.lt.s32.totalorder %s13, 1
      %s129 = scalar_select %p128, %s13, 1
      %s130 = smul.addr %s129, 2
      %s131 = smul.addr %s130, 4
      %s132 = scalar_lea.vmem %s0, %s131
      %p133 = pneg %p34
      %p134 = pneg %p31
      %p135 = scmp.lt.s32.totalorder %s13, 1
      %s136 = scalar_select %p135, %s13, 1
      %s137 = smul.addr %s136, 16
      %s138 = smul.addr %s137, 4
      %s139 = scalar_lea.vmem %s1, %s138
      %p140 = pneg %p60
      %p141 = pneg %p57
      %p142 = pneg %p86
      %p143 = pneg %p83
      %p144 = scmp.lt.s32.totalorder %s13, 1
      %s145 = scalar_select %p144, %s13, 1
      %s146 = smul.addr %s145, 2
      %s147 = smul.addr %s146, 8
      %s148 = scalar_lea.vmem %s2, %s147
      %p149 = scmp.lt.s32.totalorder %s13, 1
      %s150 = scalar_select %p149, %s13, 1
      %s151 = smul.addr %s150, 2
      %s152 = smul.addr %s151, 4
      %s153 = scalar_lea.vmem %s0, %s152
      %p154 = scmp.lt.s32.totalorder %s13, 1
      %s155 = scalar_select %p154, %s13, 1
      %s156 = smul.addr %s155, 16
      %s157 = smul.addr %s156, 4
      %s158 = scalar_lea.vmem %s1, %s157
      %p159 = scmp.lt.s32.totalorder %s13, 1
      %s160 = scalar_select %p159, %s13, 1
      %s161 = smul.addr %s160, 2
      %s162 = smul.addr %s161, 8
      %s163 = scalar_lea.vmem %s2, %s162
      %v165 = vld [vmem:[%s153] sm:$0xf]
      %v166 = vld [vmem:[%s153 + $0x4] sm:$0xf]
      %v167 = vld [vmem:[%s158] sm:$0xf]
      %v168 = vld [vmem:[%s158 + $0x4] sm:$0xf]
      %v169 = vld [vmem:[%s158 + $0x8] sm:$0xf]
      %v170 = vld [vmem:[%s158 + $0xc] sm:$0xf]
      %v171 = vld [vmem:[%s158 + $0x10] sm:$0xf]
      %v172 = vld [vmem:[%s158 + $0x14] sm:$0xf]
      %v173 = vld [vmem:[%s158 + $0x18] sm:$0xf]
      %v174 = vld [vmem:[%s158 + $0x1c] sm:$0xf]
      %v175 = vld [vmem:[%s158 + $0x20] sm:$0xf]
      %v176 = vld [vmem:[%s158 + $0x24] sm:$0xf]
      %v177 = vld [vmem:[%s158 + $0x28] sm:$0xf]
      %v178 = vld [vmem:[%s158 + $0x2c] sm:$0xf]
      %v179 = vld [vmem:[%s158 + $0x30] sm:$0xf]
      %v180 = vld [vmem:[%s158 + $0x34] sm:$0xf]
      %v181 = vld [vmem:[%s158 + $0x38] sm:$0xf]
      %v182 = vld [vmem:[%s158 + $0x3c] sm:$0xf]
      %v185 = vunpack.c.l.b16 %v165
      %v186 = vunpack.c.l.b16 %v166
      %v187 = vpack.c.b16 %v186, %v185
      %v205 = vunpack.c.l.b16 %v167
      %v206 = vunpack.c.l.b16 %v168
      %v207 = vunpack.c.l.b16 %v169
      %v208 = vunpack.c.l.b16 %v170
      %v209 = vunpack.c.l.b16 %v171
      %v210 = vunpack.c.l.b16 %v172
      %v211 = vunpack.c.l.b16 %v173
      %v212 = vunpack.c.l.b16 %v174
      %v213 = vunpack.c.l.b16 %v175
      %v214 = vunpack.c.l.b16 %v176
      %v215 = vunpack.c.l.b16 %v177
      %v216 = vunpack.c.l.b16 %v178
      %v217 = vunpack.c.l.b16 %v179
      %v218 = vunpack.c.l.b16 %v180
      %v219 = vunpack.c.l.b16 %v181
      %v220 = vunpack.c.l.b16 %v182
      %v221 = vpack.c.b16 %v206, %v205
      %v222 = vpack.c.b16 %v208, %v207
      %v223 = vpack.c.b16 %v210, %v209
      %v224 = vpack.c.b16 %v212, %v211
      %v225 = vpack.c.b16 %v214, %v213
      %v226 = vpack.c.b16 %v216, %v215
      %v227 = vpack.c.b16 %v218, %v217
      %v228 = vpack.c.b16 %v220, %v219
      %237 = vmatprep.subr.bf16.mxu0 0
      %238 = vmatpush1.bf16.msra.mxu0 %v221
      %239 = vmatprep.subr.bf16.mxu0 0
      %240 = vmatpush1.bf16.msra.mxu0 %v222
      %241 = vmatprep.subr.bf16.mxu0 0
      %242 = vmatpush1.bf16.msra.mxu0 %v223
      %243 = vmatprep.subr.bf16.mxu0 0
      %244 = vmatpush1.bf16.msra.mxu0 %v224
      %245 = vmatprep.subr.bf16.mxu0 0
      %246 = vmatpush1.bf16.msra.mxu0 %v225
      %247 = vmatprep.subr.bf16.mxu0 0
      %248 = vmatpush1.bf16.msra.mxu0 %v226
      %249 = vmatprep.subr.bf16.mxu0 0
      %250 = vmatpush1.bf16.msra.mxu0 %v227
      %251 = vmatprep.subr.bf16.mxu0 0
      %252 = vmatpush1.bf16.msra.mxu0 %v228
      %253 = vmatprep.subr.bf16.mxu0 0
      %254 = vmatpush1.bf16.msra.mxu0 0
      %255 = vmatprep.subr.bf16.mxu0 0
      %256 = vmatpush1.bf16.msra.mxu0 0
      %257 = vmatprep.subr.bf16.mxu0 0
      %258 = vmatpush1.bf16.msra.mxu0 0
      %259 = vmatprep.subr.bf16.mxu0 0
      %260 = vmatpush1.bf16.msra.mxu0 0
      %261 = vmatprep.subr.bf16.mxu0 0
      %262 = vmatpush1.bf16.msra.mxu0 0
      %263 = vmatprep.subr.bf16.mxu0 0
      %264 = vmatpush1.bf16.msra.mxu0 0
      %265 = vmatprep.subr.bf16.mxu0 0
      %266 = vmatpush1.bf16.msra.mxu0 0
      %267 = vmatprep.subr.bf16.mxu0 0
      %268 = vmatpush1.bf16.msra.mxu0 0
      %269 = vmatprep.mubr.bf16.mxu0 0
      %270 = vmatmul.mubr.bf16.gmra.mrb[0].mxu0 %v187
      %v271 = vpop.f32.mrb[0].mxu0
      %v272 = vadd.f32 0.0, %v271
      %v273 = vpop.f32.mrb[0].mxu0
      %v274 = vpop.f32.mrb[0].mxu0
      %v275 = vadd.f32 0.0, %v274
      %v276 = vpop.f32.mrb[0].mxu0
      %277 = vdwg.mxu0
      %vm280 = vcmask 1046528
      %v281 = vrot.slane %v272, 1
      %v282 = vrot.slane %v275, 1
      %v283 = vsel %vm280, %v281, %v282
      %284 = vrot.lane.b32.xlu0 %v283, 119
      %v285 = vpop.permute.xlu0 %284
      %286 = vrot.lane.b32.xlu0 %v282, 119
      %v287 = vpop.permute.xlu0 %286
      %v290 = vadd.f32 %v272, %v285
      %v291 = vadd.f32 %v275, %v287
      %vm292 = vcmask 1045504
      %v293 = vrot.slane %v272, 2
      %v294 = vrot.slane %v275, 2
      %v295 = vsel %vm292, %v293, %v294
      %296 = vrot.lane.b32.xlu0 %v295, 110
      %v297 = vpop.permute.xlu0 %296
      %298 = vrot.lane.b32.xlu0 %v294, 110
      %v299 = vpop.permute.xlu0 %298
      %v302 = vadd.f32 %v290, %v297
      %v303 = vadd.f32 %v291, %v299
      %vm304 = vcmask 1044480
      %v305 = vrot.slane %v272, 3
      %v306 = vrot.slane %v275, 3
      %v307 = vsel %vm304, %v305, %v306
      %308 = vrot.lane.b32.xlu0 %v307, 101
      %v309 = vpop.permute.xlu0 %308
      %310 = vrot.lane.b32.xlu0 %v306, 101
      %v311 = vpop.permute.xlu0 %310
      %v314 = vadd.f32 %v302, %v309
      %v315 = vadd.f32 %v303, %v311
      %vm316 = vcmask 1043456
      %v317 = vrot.slane %v272, 4
      %v318 = vrot.slane %v275, 4
      %v319 = vsel %vm316, %v317, %v318
      %320 = vrot.lane.b32.xlu0 %v319, 92
      %v321 = vpop.permute.xlu0 %320
      %322 = vrot.lane.b32.xlu0 %v318, 92
      %v323 = vpop.permute.xlu0 %322
      %v326 = vadd.f32 %v314, %v321
      %v327 = vadd.f32 %v315, %v323
      %vm328 = vcmask 1042432
      %v329 = vrot.slane %v272, 5
      %v330 = vrot.slane %v275, 5
      %v331 = vsel %vm328, %v329, %v330
      %332 = vrot.lane.b32.xlu0 %v331, 83
      %v333 = vpop.permute.xlu0 %332
      %334 = vrot.lane.b32.xlu0 %v330, 83
      %v335 = vpop.permute.xlu0 %334
      %v338 = vadd.f32 %v326, %v333
      %v339 = vadd.f32 %v327, %v335
      %vm340 = vcmask 1041408
      %v341 = vrot.slane %v272, 6
      %v342 = vrot.slane %v275, 6
      %v343 = vsel %vm340, %v341, %v342
      %344 = vrot.lane.b32.xlu0 %v343, 74
      %v345 = vpop.permute.xlu0 %344
      %346 = vrot.lane.b32.xlu0 %v342, 74
      %v347 = vpop.permute.xlu0 %346
      %v350 = vadd.f32 %v338, %v345
      %v351 = vadd.f32 %v339, %v347
      %vm352 = vcmask 1040384
      %v353 = vrot.slane %v272, 7
      %v354 = vrot.slane %v275, 7
      %v355 = vsel %vm352, %v353, %v354
      %356 = vrot.lane.b32.xlu0 %v355, 65
      %v357 = vpop.permute.xlu0 %356
      %358 = vrot.lane.b32.xlu0 %v354, 65
      %v359 = vpop.permute.xlu0 %358
      %v362 = vadd.f32 %v350, %v357
      %v363 = vadd.f32 %v351, %v359
      %vm364 = vcmask 72704
      %365 = vst.msk [vmem:[%s163] sm:$0xff] %vm364, %v362
      %vm366 = vcmask 65536
      %367 = vst.msk [vmem:[%s163 + $0x8] sm:$0x1] %vm366, %v363
      %p368 = scmp.lt.s32.totalorder %s13, 1
      %s369 = scalar_select %p368, %s13, 1
      %s370 = smul.addr %s369, 2
      %s371 = smul.addr %s370, 8
      %s372 = scalar_lea.vmem %s2, %s371
      // Predicated region
      $region29: #{tpu_custom_call.1} parent=27 // pred_check
        %p373 = pneg %p83
      $region30: #{tpu_custom_call.1} parent=27 // pred_check_branch
        %375 = sbr.rel (%p373) target = $region32
      $region31: #{tpu_custom_call.1} parent=27 // pred_region
        _
      $region32: #{tpu_custom_call.1} parent=27 // pred_fallthru
        _
    $region28: #{tpu_custom_call.1} parent=5 // pred_fallthru
      _
    %p376 = scmp.le.s32.totalorder 2, %s8
    // Predicated region
    $region33: #{tpu_custom_call.1} parent=5 // pred_check
      %p377 = pneg %p376
    $region34: #{tpu_custom_call.1} parent=5 // pred_check_branch
      %379 = sbr.rel (%p377) target = $region36
    $region35: #{tpu_custom_call.1} parent=5 // pred_region
      %s380 = ssub.s32 %s8, 2
      // Predicated region
      $region37: #{tpu_custom_call.1} parent=35 // pred_check
        %p381 = pneg %p89
      $region38: #{tpu_custom_call.1} parent=35 // pred_check_branch
        %383 = sbr.rel (%p381) target = $region40
      $region39: #{tpu_custom_call.1} parent=35 // pred_region
        %p384 = scmp.lt.s32.totalorder %s14, 1
        %s385 = scalar_select %p384, %s14, 1
        %s386 = smul.addr %s385, 2
        %s387 = smul.addr %s386, 8
        %s388 = scalar_lea.vmem %s2, %s387
      $region40: #{tpu_custom_call.1} parent=35 // pred_fallthru
        _
    $region36: #{tpu_custom_call.1} parent=5 // pred_fallthru
      _
  $region6: #{tpu_custom_call.1} parent=0 // loop_footer
    %s12 = sadd.s32 1, %s8
  $region7: #{tpu_custom_call.1} parent=0 // loop_footer_branch
    %7 = sbr.rel target = $region3
  $region8: #{tpu_custom_call.1} parent=0 // loop_exit
    _

</llo_original>
